<compile_context>
chip_gen: v7x
topology: tpu7x:2x2x1
jax: 0.10.0
libtpu: 0.0.40
codegen_flags: <defaults>
</compile_context>

<pallas_src>
import jax
import jax.numpy as jnp
from jax import lax
from jax.experimental import pallas as pl
from jax.experimental.pallas import tpu as pltpu


def _make_residual_block_kernel(dilation: int, t_out: int, skip_size: int):
    """Build the kernel with static dilation / output-length / skip-length baked in."""

    def kernel(x_ref, wcat_ref, wres_ref, bres_ref, wskip_ref, bskip_ref,
               res_ref, skip_ref):
        # x_ref:    (C_res, T)        one batch element, NCT layout (time on lanes)
        # wcat_ref: (C_res, 2*C_res)  [W_d[:, :, 0] | W_d[:, :, 1]]
        # wres_ref: (C_res, C_res)    1x1 residual conv weight
        # bres_ref: (C_res, 1)        residual conv bias
        # wskip_ref:(C_skip, C_res)   1x1 skip conv weight
        # bskip_ref:(C_skip, 1)       skip conv bias
        # res_ref:  (C_res, T-d)      residual output
        # skip_ref: (C_skip, skip_size)
        x = x_ref[...]                                  # (C_res, T)
        x_tail = x[:, dilation:]                        # (C_res, T-d)  == x[:, :, -(T-d):]

        # --- dilated causal conv, both taps fused into one matmul (K = 2*C_res) ---
        x_cat = jnp.concatenate([x[:, :t_out], x_tail], axis=0)      # (2*C_res, T-d)
        pre = jnp.dot(wcat_ref[...], x_cat,
                      preferred_element_type=jnp.float32)            # (C_res, T-d)

        # --- gated activation (EUP transcendentals) ---
        gated = jnp.tanh(pre) * jax.nn.sigmoid(pre)                   # (C_res, T-d)

        # --- residual branch: 1x1 conv + bias + skip-connection add ---
        res = (jnp.dot(wres_ref[...], gated, preferred_element_type=jnp.float32)
               + bres_ref[...] + x_tail)
        res_ref[...] = res.astype(res_ref.dtype)

        # --- skip branch: 1x1 conv over only the last `skip_size` timesteps ---
        gated_tail = gated[:, t_out - skip_size:]                     # (C_res, skip_size)
        skip = (jnp.dot(wskip_ref[...], gated_tail, preferred_element_type=jnp.float32)
                + bskip_ref[...])
        skip_ref[...] = skip.astype(skip_ref.dtype)

    return kernel


def residual_block_forward(x, w_dilated, w_res, b_res, w_skip, b_skip,
                           *, dilation: int, skip_size: int):
    """WaveNet ResidualBlock forward.

    x:         (N, C_res, T)        float32 (PyTorch NCT layout)
    w_dilated: (C_res, C_res, 2)    dilated causal conv weight (no bias)
    w_res:     (C_res, C_res, 1)    1x1 residual conv weight
    b_res:     (C_res,)             residual conv bias
    w_skip:    (C_skip, C_res, 1)   1x1 skip conv weight
    b_skip:    (C_skip,)            skip conv bias

    Returns (res, skip): shapes (N, C_res, T - dilation), (N, C_skip, skip_size).
    """
    N, C_res, T = x.shape
    C_skip = w_skip.shape[0]
    t_out = T - dilation
    assert t_out >= 1, "sequence too short for this dilation"
    assert skip_size <= t_out, "skip_size must be <= T - dilation"

    dtype = jnp.float32
    x = x.astype(dtype)
    # Fuse the two conv taps into one (C_res, 2*C_res) weight -> single MXU matmul.
    w_cat = jnp.concatenate([w_dilated[:, :, 0], w_dilated[:, :, 1]], axis=1).astype(dtype)
    w_res2 = w_res[:, :, 0].astype(dtype)
    w_skip2 = w_skip[:, :, 0].astype(dtype)
    b_res2 = b_res.reshape(C_res, 1).astype(jnp.float32)
    b_skip2 = b_skip.reshape(C_skip, 1).astype(jnp.float32)

    kernel = _make_residual_block_kernel(dilation, t_out, skip_size)

    res, skip = pl.pallas_call(
        kernel,
        out_shape=(
            jax.ShapeDtypeStruct((N, C_res, t_out), dtype),
            jax.ShapeDtypeStruct((N, C_skip, skip_size), dtype),
        ),
        grid_spec=pltpu.PrefetchScalarGridSpec(
            num_scalar_prefetch=0,
            grid=(N,),
            in_specs=[
                pl.BlockSpec((None, C_res, T), lambda n: (n, 0, 0)),       # x (batch-squeezed)
                pl.BlockSpec((C_res, 2 * C_res), lambda n: (0, 0)),         # w_cat
                pl.BlockSpec((C_res, C_res), lambda n: (0, 0)),             # w_res
                pl.BlockSpec((C_res, 1), lambda n: (0, 0)),                 # b_res
                pl.BlockSpec((C_skip, C_res), lambda n: (0, 0)),            # w_skip
                pl.BlockSpec((C_skip, 1), lambda n: (0, 0)),                # b_skip
            ],
            out_specs=[
                pl.BlockSpec((None, C_res, t_out), lambda n: (n, 0, 0)),    # residual out
                pl.BlockSpec((None, C_skip, skip_size), lambda n: (n, 0, 0)),  # skip out
            ],
        ),
        compiler_params=pltpu.CompilerParams(
            dimension_semantics=("parallel",)),
    )(x, w_cat, w_res2, b_res2, w_skip2, b_skip2)

    return res, skip


def _reference(x, w_dilated, w_res, b_res, w_skip, b_skip, dilation, skip_size):
    """Pure-JAX reference of ResidualBlock.forward (for the self-test)."""
    T = x.shape[-1]
    t_out = T - dilation
    x0 = x[:, :, :t_out]
    x1 = x[:, :, dilation:]
    hi = lax.Precision.HIGHEST
    pre = (jnp.einsum("oc,nct->not", w_dilated[:, :, 0], x0, precision=hi)
           + jnp.einsum("oc,nct->not", w_dilated[:, :, 1], x1, precision=hi))
    gated = jnp.tanh(pre) * jax.nn.sigmoid(pre)
    res = (jnp.einsum("oc,nct->not", w_res[:, :, 0], gated, precision=hi)
           + b_res[None, :, None] + x1)
    skip = (jnp.einsum("oc,nct->not", w_skip[:, :, 0], gated, precision=hi)
            + b_skip[None, :, None])
    return res, skip[:, :, -skip_size:]


if __name__ == "__main__":
    key = jax.random.PRNGKey(0)
    k = jax.random.split(key, 6)

    N, C_res, C_skip, T = 2, 4, 8, 16
    dilation, skip_size = 2, 8

    x = jax.random.normal(k[0], (N, C_res, T), dtype=jnp.float32)
    w_dilated = jax.random.normal(k[1], (C_res, C_res, 2), dtype=jnp.float32) * 0.5
    w_res = jax.random.normal(k[2], (C_res, C_res, 1), dtype=jnp.float32) * 0.5
    b_res = jax.random.normal(k[3], (C_res,), dtype=jnp.float32) * 0.1
    w_skip = jax.random.normal(k[4], (C_skip, C_res, 1), dtype=jnp.float32) * 0.5
    b_skip = jax.random.normal(k[5], (C_skip,), dtype=jnp.float32) * 0.1

    res, skip = residual_block_forward(
        x, w_dilated, w_res, b_res, w_skip, b_skip,
        dilation=dilation, skip_size=skip_size)
    res, skip = jax.block_until_ready((res, skip))

    res_ref, skip_ref = _reference(
        x, w_dilated, w_res, b_res, w_skip, b_skip, dilation, skip_size)

    assert res.shape == (N, C_res, T - dilation)
    assert skip.shape == (N, C_skip, skip_size)
    assert jnp.allclose(res, res_ref, atol=2e-3, rtol=2e-3)
    assert jnp.allclose(skip, skip_ref, atol=2e-3, rtol=2e-3)

    print("KERNEL_OK")
</pallas_src>

<mosaic_0001>
module attributes {stable_mosaic.version = 11 : i64} {
  func.func @kernel(%arg0: i32, %arg1: memref<1x4x16xf32, #tpu.memory_space<vmem>>, %arg2: memref<4x8xf32, #tpu.memory_space<vmem>>, %arg3: memref<4x4xf32, #tpu.memory_space<vmem>>, %arg4: memref<4x1xf32, #tpu.memory_space<vmem>>, %arg5: memref<8x4xf32, #tpu.memory_space<vmem>>, %arg6: memref<8x1xf32, #tpu.memory_space<vmem>>, %arg7: memref<1x4x14xf32, #tpu.memory_space<vmem>>, %arg8: memref<1x8x8xf32, #tpu.memory_space<vmem>>) attributes {dimension_semantics = [#tpu.dimension_semantics<parallel>], iteration_bounds = array<i64: 2>, scalar_prefetch = 0 : i64, scratch_operands = 0 : i64, tpu.core_type = #tpu.core_type<tc>, window_params = [{transform_indices = @transform_0, window_bounds = array<i64: 1, 4, 16>}, {pipeline_mode = #tpu.pipeline_mode<synchronous>, transform_indices = @transform_1, window_bounds = array<i64: 4, 8>}, {pipeline_mode = #tpu.pipeline_mode<synchronous>, transform_indices = @transform_2, window_bounds = array<i64: 4, 4>}, {pipeline_mode = #tpu.pipeline_mode<synchronous>, transform_indices = @transform_3, window_bounds = array<i64: 4, 1>}, {pipeline_mode = #tpu.pipeline_mode<synchronous>, transform_indices = @transform_4, window_bounds = array<i64: 8, 4>}, {pipeline_mode = #tpu.pipeline_mode<synchronous>, transform_indices = @transform_5, window_bounds = array<i64: 8, 1>}, {transform_indices = @transform_6, window_bounds = array<i64: 1, 4, 14>}, {transform_indices = @transform_7, window_bounds = array<i64: 1, 8, 8>}]} {
    %c0 = arith.constant 0 : index
    %c0_0 = arith.constant 0 : index
    %c0_1 = arith.constant 0 : index
    %0 = vector.load %arg1[%c0, %c0_0, %c0_1] : memref<1x4x16xf32, #tpu.memory_space<vmem>>, vector<1x4x16xf32>
    %1 = vector.shape_cast %0 : vector<1x4x16xf32> to vector<4x16xf32>
    %2 = vector.extract_strided_slice %1 {offsets = [0, 2], sizes = [4, 14], strides = [1, 1]} : vector<4x16xf32> to vector<4x14xf32>
    %3 = vector.extract_strided_slice %1 {offsets = [0, 0], sizes = [4, 14], strides = [1, 1]} : vector<4x16xf32> to vector<4x14xf32>
    %4 = tpu.concatenate %3, %2 in 0 : vector<4x14xf32>, vector<4x14xf32> -> vector<8x14xf32>
    %c0_2 = arith.constant 0 : index
    %c0_3 = arith.constant 0 : index
    %5 = vector.load %arg2[%c0_2, %c0_3] : memref<4x8xf32, #tpu.memory_space<vmem>>, vector<4x8xf32>
    %cst = arith.constant dense<0.000000e+00> : vector<4x14xf32>
    %6 = tpu.matmul %5, %4, %cst {dimension_numbers = #tpu.dot_dimension_numbers<[1], [0], [0], [1], [0, 0, 1, 1], [], []>} : vector<4x8xf32>, vector<8x14xf32>, vector<4x14xf32> -> vector<4x14xf32>
    %7 = math.tanh %6 : vector<4x14xf32>
    %8 = arith.negf %6 : vector<4x14xf32>
    %9 = math.exp %8 : vector<4x14xf32>
    %cst_4 = arith.constant 1.000000e+00 : f32
    %10 = vector.broadcast %cst_4 : f32 to vector<4x14xf32>
    %11 = arith.addf %10, %9 : vector<4x14xf32>
    %12 = arith.divf %10, %11 : vector<4x14xf32>
    %13 = arith.mulf %7, %12 : vector<4x14xf32>
    %c0_5 = arith.constant 0 : index
    %c0_6 = arith.constant 0 : index
    %14 = vector.load %arg3[%c0_5, %c0_6] : memref<4x4xf32, #tpu.memory_space<vmem>>, vector<4x4xf32>
    %cst_7 = arith.constant dense<0.000000e+00> : vector<4x14xf32>
    %15 = tpu.matmul %14, %13, %cst_7 {dimension_numbers = #tpu.dot_dimension_numbers<[1], [0], [0], [1], [0, 0, 1, 1], [], []>} : vector<4x4xf32>, vector<4x14xf32>, vector<4x14xf32> -> vector<4x14xf32>
    %c0_8 = arith.constant 0 : index
    %c0_9 = arith.constant 0 : index
    %16 = vector.load %arg4[%c0_8, %c0_9] : memref<4x1xf32, #tpu.memory_space<vmem>>, vector<4x1xf32>
    %17 = vector.broadcast %16 : vector<4x1xf32> to vector<4x14xf32>
    %18 = arith.addf %15, %17 : vector<4x14xf32>
    %19 = arith.addf %18, %2 : vector<4x14xf32>
    %c0_10 = arith.constant 0 : index
    %c0_11 = arith.constant 0 : index
    %c0_12 = arith.constant 0 : index
    %20 = vector.load %arg7[%c0_10, %c0_11, %c0_12] : memref<1x4x14xf32, #tpu.memory_space<vmem>>, vector<1x4x14xf32>
    %21 = vector.shape_cast %20 : vector<1x4x14xf32> to vector<4x14xf32>
    %22 = vector.shape_cast %19 : vector<4x14xf32> to vector<1x4x14xf32>
    tpu.vector_store %arg7[%c0_10, %c0_11, %c0_12], %22 {strides = array<i32>} : memref<1x4x14xf32, #tpu.memory_space<vmem>>, vector<1x4x14xf32>,
    %23 = vector.extract_strided_slice %13 {offsets = [0, 6], sizes = [4, 8], strides = [1, 1]} : vector<4x14xf32> to vector<4x8xf32>
    %c0_13 = arith.constant 0 : index
    %c0_14 = arith.constant 0 : index
    %24 = vector.load %arg5[%c0_13, %c0_14] : memref<8x4xf32, #tpu.memory_space<vmem>>, vector<8x4xf32>
    %cst_15 = arith.constant dense<0.000000e+00> : vector<8x8xf32>
    %25 = tpu.matmul %24, %23, %cst_15 {dimension_numbers = #tpu.dot_dimension_numbers<[1], [0], [0], [1], [0, 0, 1, 1], [], []>} : vector<8x4xf32>, vector<4x8xf32>, vector<8x8xf32> -> vector<8x8xf32>
    %c0_16 = arith.constant 0 : index
    %c0_17 = arith.constant 0 : index
    %26 = vector.load %arg6[%c0_16, %c0_17] : memref<8x1xf32, #tpu.memory_space<vmem>>, vector<8x1xf32>
    %27 = vector.broadcast %26 : vector<8x1xf32> to vector<8x8xf32>
    %28 = arith.addf %25, %27 : vector<8x8xf32>
    %c0_18 = arith.constant 0 : index
    %c0_19 = arith.constant 0 : index
    %c0_20 = arith.constant 0 : index
    %29 = vector.load %arg8[%c0_18, %c0_19, %c0_20] : memref<1x8x8xf32, #tpu.memory_space<vmem>>, vector<1x8x8xf32>
    %30 = vector.shape_cast %29 : vector<1x8x8xf32> to vector<8x8xf32>
    %31 = vector.shape_cast %28 : vector<8x8xf32> to vector<1x8x8xf32>
    tpu.vector_store %arg8[%c0_18, %c0_19, %c0_20], %31 {strides = array<i32>} : memref<1x8x8xf32, #tpu.memory_space<vmem>>, vector<1x8x8xf32>,
    return
  }
  func.func @transform_0(%arg0: i32) -> (i32, i32, i32) {
    %c0_i32 = arith.constant 0 : i32
    %c0_i32_0 = arith.constant 0 : i32
    %c0_i32_1 = arith.constant 0 : i32
    return %arg0, %c0_i32, %c0_i32_0 : i32, i32, i32
  }
  func.func @transform_1(%arg0: i32) -> (i32, i32) {
    %c0_i32 = arith.constant 0 : i32
    %c0_i32_0 = arith.constant 0 : i32
    %c0_i32_1 = arith.constant 0 : i32
    return %c0_i32, %c0_i32_0 : i32, i32
  }
  func.func @transform_2(%arg0: i32) -> (i32, i32) {
    %c0_i32 = arith.constant 0 : i32
    %c0_i32_0 = arith.constant 0 : i32
    %c0_i32_1 = arith.constant 0 : i32
    return %c0_i32, %c0_i32_0 : i32, i32
  }
  func.func @transform_3(%arg0: i32) -> (i32, i32) {
    %c0_i32 = arith.constant 0 : i32
    %c0_i32_0 = arith.constant 0 : i32
    %c0_i32_1 = arith.constant 0 : i32
    return %c0_i32, %c0_i32_0 : i32, i32
  }
  func.func @transform_4(%arg0: i32) -> (i32, i32) {
    %c0_i32 = arith.constant 0 : i32
    %c0_i32_0 = arith.constant 0 : i32
    %c0_i32_1 = arith.constant 0 : i32
    return %c0_i32, %c0_i32_0 : i32, i32
  }
  func.func @transform_5(%arg0: i32) -> (i32, i32) {
    %c0_i32 = arith.constant 0 : i32
    %c0_i32_0 = arith.constant 0 : i32
    %c0_i32_1 = arith.constant 0 : i32
    return %c0_i32, %c0_i32_0 : i32, i32
  }
  func.func @transform_6(%arg0: i32) -> (i32, i32, i32) {
    %c0_i32 = arith.constant 0 : i32
    %c0_i32_0 = arith.constant 0 : i32
    %c0_i32_1 = arith.constant 0 : i32
    return %arg0, %c0_i32, %c0_i32_0 : i32, i32, i32
  }
  func.func @transform_7(%arg0: i32) -> (i32, i32, i32) {
    %c0_i32 = arith.constant 0 : i32
    %c0_i32_0 = arith.constant 0 : i32
    %c0_i32_1 = arith.constant 0 : i32
    return %arg0, %c0_i32, %c0_i32_0 : i32, i32, i32
  }
}

</mosaic_0001>

<llo_original>
// kernel: tpu_custom_call.1
$region0: #{tpu_custom_call.1}
  #allocation0 [shape = 'u32[]', space=smem, size = 0x4, offset = 0x4, fixed_abs, tag = 'smem constant byte address 0x4 - core index']
  #allocation1 [shape = 'u32[144,128]{1,0:T(1,128)}', space=vmem, size = 0x12000, scoped, tag = 'internal scratch']
  %s0 = inlined_call_operand.vmem [shape: f32[2,4,16], index: 0, kind: input, shape index: {}]
  %s1 = inlined_call_operand.vmem [shape: f32[4,8], index: 1, kind: input, shape index: {}]
  %s2 = inlined_call_operand.vmem [shape: f32[4,4], index: 2, kind: input, shape index: {}]
  %s3 = inlined_call_operand.vmem [shape: f32[4,1], index: 3, kind: input, shape index: {}]
  %s4 = inlined_call_operand.vmem [shape: f32[8,4], index: 4, kind: input, shape index: {}]
  %s5 = inlined_call_operand.vmem [shape: f32[8,1], index: 5, kind: input, shape index: {}]
  %s6 = inlined_call_operand.hbm [shape: f32[2,4,14], index: 6, kind: output, shape index: {0}]
  %s7 = inlined_call_operand.hbm [shape: f32[2,8,8], index: 7, kind: output, shape index: {1}]
  %8 = xla_tuple %s6, %s7
  %s9 = sld [smem:[#allocation0]]
  $region65: #{tpu_custom_call.1} parent=0
    _
  %s11 = ssub.s32 1, %s9
  %s12 = scalar_select 0, %s11, %s9
  $region1: #{tpu_custom_call.1} parent=0
    #allocation2 [shape = 'u8[4096]{0}', space=vmem, size = 0x1000, scoped, tag = 'output window, operand 0']
    #allocation3 [shape = 's32[2]{0}', space=sflag, size = 0x8, scoped, tag = 'scoped memory for tpu_custom_call.1']
    #allocation4 [shape = 'u8[8192]{0}', space=vmem, size = 0x2000, scoped, tag = 'output window, operand 1']
    #allocation5 [shape = 's32[2]{0}', space=sflag, size = 0x8, scoped, tag = 'scoped memory for tpu_custom_call.1']
    %13 = vsyncpa [#allocation3], 0
    %s14 = scalar_lea.sflag [#allocation3], 1
    %15 = vsyncpa %s14, 0
    %16 = vsyncpa [#allocation5], 0
    %s17 = scalar_lea.sflag [#allocation5], 1
    %18 = vsyncpa %s17, 0
    loop: start=0, step=1, limit=4
    $region2: #{tpu_custom_call.1} parent=1 // loop_pre_header
      _
    $region3: #{tpu_custom_call.1} parent=1 // loop_header
      %s20 = sphi 0, %s24
      %p21 = scmp.ge.s32.totalorder %s20, 4
      %s30 = sphi 0, %s32
      %s33 = sphi 0, %s30
      %s34 = sphi 0, %s33
      %s50 = sphi 0, %s34
      %s54 = sphi 0, %s54
      %s56 = sphi 0, %s54
      %s57 = sphi 0, %s56
      %s71 = sphi 0, %s57
      %s75 = sphi 0, %s75
      %s77 = sphi 0, %s75
      %s78 = sphi 0, %s77
      %s92 = sphi 0, %s78
      %s96 = sphi 0, %s96
      %s98 = sphi 0, %s96
      %s99 = sphi 0, %s98
      %s113 = sphi 0, %s99
      %s117 = sphi 0, %s117
      %s119 = sphi 0, %s117
      %s120 = sphi 0, %s119
      %s134 = sphi 0, %s120
      %s138 = sphi 0, %s138
      %s140 = sphi 0, %s138
      %s141 = sphi 0, %s140
      %s155 = sphi 0, %s141
      %s161 = sphi 0, %s163
      %s164 = sphi 0, %s161
      %s165 = sphi 0, %s164
      %s181 = sphi 0, %s165
      %s187 = sphi 0, %s189
      %s190 = sphi 0, %s187
      %s191 = sphi 0, %s190
      %s207 = sphi 0, %s191
    $region4: #{tpu_custom_call.1} parent=1 // loop_header_branch
      %23 = sbr.rel (%p21) target = $region8
    $region5: #{tpu_custom_call.1} parent=1 // loop_body
      %s25 = ssub.s32 %s20, 1
      %s26 = ssub.s32 %s20, 2
      %s27 = sadd.s32 %s20, 1
      %s28 = ssub.s32 %s20, %s27
      %p29 = scmp.eq.s32.totalorder %s28, 0
      %s31 = sadd.s32 %s30, 1
      %s32 = scalar_select %p29, %s30, %s31
      %p35 = pneg %p29
      %p36 = scmp.eq.s32.totalorder %s20, 1
      %p37 = por %p35, %p36
      %p38 = scmp.ne.s32.totalorder %s30, %s33
      %p39 = scmp.eq.s32.totalorder %s20, 0
      %p40 = por %p38, %p39
      %p41 = scmp.ne.s32.totalorder %s30, %s33
      %p42 = scmp.eq.s32.totalorder %s25, 1
      %p43 = por %p41, %p42
      %p44 = scmp.ne.s32.totalorder %s33, %s34
      %p45 = scmp.eq.s32.totalorder %s25, 0
      %p46 = por %p44, %p45
      %p47 = scmp.ne.s32.totalorder %s33, %s34
      %p48 = scmp.eq.s32.totalorder %s26, 1
      %p49 = por %p47, %p48
      %p51 = scmp.ne.s32.totalorder %s34, %s50
      %p52 = scmp.eq.s32.totalorder %s26, 0
      %p53 = por %p51, %p52
      %s55 = sadd.s32 %s54, 1
      %p58 = scmp.eq.s32.totalorder %s20, 1
      %p59 = scmp.ne.s32.totalorder %s54, %s56
      %p60 = scmp.eq.s32.totalorder %s20, 0
      %p61 = por %p59, %p60
      %p62 = scmp.ne.s32.totalorder %s54, %s56
      %p63 = scmp.eq.s32.totalorder %s25, 1
      %p64 = por %p62, %p63
      %p65 = scmp.ne.s32.totalorder %s56, %s57
      %p66 = scmp.eq.s32.totalorder %s25, 0
      %p67 = por %p65, %p66
      %p68 = scmp.ne.s32.totalorder %s56, %s57
      %p69 = scmp.eq.s32.totalorder %s26, 1
      %p70 = por %p68, %p69
      %p72 = scmp.ne.s32.totalorder %s57, %s71
      %p73 = scmp.eq.s32.totalorder %s26, 0
      %p74 = por %p72, %p73
      %s76 = sadd.s32 %s75, 1
      %p79 = scmp.eq.s32.totalorder %s20, 1
      %p80 = scmp.ne.s32.totalorder %s75, %s77
      %p81 = scmp.eq.s32.totalorder %s20, 0
      %p82 = por %p80, %p81
      %p83 = scmp.ne.s32.totalorder %s75, %s77
      %p84 = scmp.eq.s32.totalorder %s25, 1
      %p85 = por %p83, %p84
      %p86 = scmp.ne.s32.totalorder %s77, %s78
      %p87 = scmp.eq.s32.totalorder %s25, 0
      %p88 = por %p86, %p87
      %p89 = scmp.ne.s32.totalorder %s77, %s78
      %p90 = scmp.eq.s32.totalorder %s26, 1
      %p91 = por %p89, %p90
      %p93 = scmp.ne.s32.totalorder %s78, %s92
      %p94 = scmp.eq.s32.totalorder %s26, 0
      %p95 = por %p93, %p94
      %s97 = sadd.s32 %s96, 1
      %p100 = scmp.eq.s32.totalorder %s20, 1
      %p101 = scmp.ne.s32.totalorder %s96, %s98
      %p102 = scmp.eq.s32.totalorder %s20, 0
      %p103 = por %p101, %p102
      %p104 = scmp.ne.s32.totalorder %s96, %s98
      %p105 = scmp.eq.s32.totalorder %s25, 1
      %p106 = por %p104, %p105
      %p107 = scmp.ne.s32.totalorder %s98, %s99
      %p108 = scmp.eq.s32.totalorder %s25, 0
      %p109 = por %p107, %p108
      %p110 = scmp.ne.s32.totalorder %s98, %s99
      %p111 = scmp.eq.s32.totalorder %s26, 1
      %p112 = por %p110, %p111
      %p114 = scmp.ne.s32.totalorder %s99, %s113
      %p115 = scmp.eq.s32.totalorder %s26, 0
      %p116 = por %p114, %p115
      %s118 = sadd.s32 %s117, 1
      %p121 = scmp.eq.s32.totalorder %s20, 1
      %p122 = scmp.ne.s32.totalorder %s117, %s119
      %p123 = scmp.eq.s32.totalorder %s20, 0
      %p124 = por %p122, %p123
      %p125 = scmp.ne.s32.totalorder %s117, %s119
      %p126 = scmp.eq.s32.totalorder %s25, 1
      %p127 = por %p125, %p126
      %p128 = scmp.ne.s32.totalorder %s119, %s120
      %p129 = scmp.eq.s32.totalorder %s25, 0
      %p130 = por %p128, %p129
      %p131 = scmp.ne.s32.totalorder %s119, %s120
      %p132 = scmp.eq.s32.totalorder %s26, 1
      %p133 = por %p131, %p132
      %p135 = scmp.ne.s32.totalorder %s120, %s134
      %p136 = scmp.eq.s32.totalorder %s26, 0
      %p137 = por %p135, %p136
      %s139 = sadd.s32 %s138, 1
      %p142 = scmp.eq.s32.totalorder %s20, 1
      %p143 = scmp.ne.s32.totalorder %s138, %s140
      %p144 = scmp.eq.s32.totalorder %s20, 0
      %p145 = por %p143, %p144
      %p146 = scmp.ne.s32.totalorder %s138, %s140
      %p147 = scmp.eq.s32.totalorder %s25, 1
      %p148 = por %p146, %p147
      %p149 = scmp.ne.s32.totalorder %s140, %s141
      %p150 = scmp.eq.s32.totalorder %s25, 0
      %p151 = por %p149, %p150
      %p152 = scmp.ne.s32.totalorder %s140, %s141
      %p153 = scmp.eq.s32.totalorder %s26, 1
      %p154 = por %p152, %p153
      %p156 = scmp.ne.s32.totalorder %s141, %s155
      %p157 = scmp.eq.s32.totalorder %s26, 0
      %p158 = por %p156, %p157
      %s159 = ssub.s32 %s20, %s27
      %p160 = scmp.eq.s32.totalorder %s159, 0
      %s162 = sadd.s32 %s161, 1
      %s163 = scalar_select %p160, %s161, %s162
      %p166 = pneg %p160
      %p167 = scmp.eq.s32.totalorder %s20, 1
      %p168 = por %p166, %p167
      %p169 = scmp.ne.s32.totalorder %s161, %s164
      %p170 = scmp.eq.s32.totalorder %s20, 0
      %p171 = por %p169, %p170
      %p172 = scmp.ne.s32.totalorder %s161, %s164
      %p173 = scmp.eq.s32.totalorder %s25, 1
      %p174 = por %p172, %p173
      %p175 = scmp.ne.s32.totalorder %s164, %s165
      %p176 = scmp.eq.s32.totalorder %s25, 0
      %p177 = por %p175, %p176
      %p178 = scmp.ne.s32.totalorder %s164, %s165
      %p179 = scmp.eq.s32.totalorder %s26, 1
      %p180 = por %p178, %p179
      %p182 = scmp.ne.s32.totalorder %s165, %s181
      %p183 = scmp.eq.s32.totalorder %s26, 0
      %p184 = por %p182, %p183
      %s185 = ssub.s32 %s20, %s27
      %p186 = scmp.eq.s32.totalorder %s185, 0
      %s188 = sadd.s32 %s187, 1
      %s189 = scalar_select %p186, %s187, %s188
      %p192 = pneg %p186
      %p193 = scmp.eq.s32.totalorder %s20, 1
      %p194 = por %p192, %p193
      %p195 = scmp.ne.s32.totalorder %s187, %s190
      %p196 = scmp.eq.s32.totalorder %s20, 0
      %p197 = por %p195, %p196
      %p198 = scmp.ne.s32.totalorder %s187, %s190
      %p199 = scmp.eq.s32.totalorder %s25, 1
      %p200 = por %p198, %p199
      %p201 = scmp.ne.s32.totalorder %s190, %s191
      %p202 = scmp.eq.s32.totalorder %s25, 0
      %p203 = por %p201, %p202
      %p204 = scmp.ne.s32.totalorder %s190, %s191
      %p205 = scmp.eq.s32.totalorder %s26, 1
      %p206 = por %p204, %p205
      %p208 = scmp.ne.s32.totalorder %s191, %s207
      %p209 = scmp.eq.s32.totalorder %s26, 0
      %p210 = por %p208, %p209
      %p211 = scmp.le.s32.totalorder 1, %s20
      %p212 = scmp.lt.s32.totalorder %s20, 3
      %p213 = pnand %p211, %p212
      %p214 = pneg %p213
      // Predicated region
      $region9: #{tpu_custom_call.1} parent=5 // pred_check
        _
      $region10: #{tpu_custom_call.1} parent=5 // pred_check_branch
        %216 = sbr.rel (%p213) target = $region12
      $region11: #{tpu_custom_call.1} parent=5 // pred_region
        %s217 = ssub.s32 %s20, 1
        // Predicated region
        $region13: #{tpu_custom_call.1} parent=11 // pred_check
          %p218 = pneg %p67
        $region14: #{tpu_custom_call.1} parent=11 // pred_check_branch
          %220 = sbr.rel (%p218) target = $region16
        $region15: #{tpu_custom_call.1} parent=11 // pred_region
          _
        $region16: #{tpu_custom_call.1} parent=11 // pred_fallthru
          _
        // Predicated region
        $region17: #{tpu_custom_call.1} parent=11 // pred_check
          %p221 = pneg %p88
        $region18: #{tpu_custom_call.1} parent=11 // pred_check_branch
          %223 = sbr.rel (%p221) target = $region20
        $region19: #{tpu_custom_call.1} parent=11 // pred_region
          _
        $region20: #{tpu_custom_call.1} parent=11 // pred_fallthru
          _
        // Predicated region
        $region21: #{tpu_custom_call.1} parent=11 // pred_check
          %p224 = pneg %p109
        $region22: #{tpu_custom_call.1} parent=11 // pred_check_branch
          %226 = sbr.rel (%p224) target = $region24
        $region23: #{tpu_custom_call.1} parent=11 // pred_region
          _
        $region24: #{tpu_custom_call.1} parent=11 // pred_fallthru
          _
        // Predicated region
        $region25: #{tpu_custom_call.1} parent=11 // pred_check
          %p227 = pneg %p130
        $region26: #{tpu_custom_call.1} parent=11 // pred_check_branch
          %229 = sbr.rel (%p227) target = $region28
        $region27: #{tpu_custom_call.1} parent=11 // pred_region
          _
        $region28: #{tpu_custom_call.1} parent=11 // pred_fallthru
          _
        // Predicated region
        $region29: #{tpu_custom_call.1} parent=11 // pred_check
          %p230 = pneg %p151
        $region30: #{tpu_custom_call.1} parent=11 // pred_check_branch
          %232 = sbr.rel (%p230) target = $region32
        $region31: #{tpu_custom_call.1} parent=11 // pred_region
          _
        $region32: #{tpu_custom_call.1} parent=11 // pred_fallthru
          _
      $region12: #{tpu_custom_call.1} parent=5 // pred_fallthru
        _
      %p233 = scmp.lt.s32.totalorder %s20, 2
      // Predicated region
      $region33: #{tpu_custom_call.1} parent=5 // pred_check
        %p234 = pneg %p233
      $region34: #{tpu_custom_call.1} parent=5 // pred_check_branch
        %236 = sbr.rel (%p234) target = $region36
      $region35: #{tpu_custom_call.1} parent=5 // pred_region
        // Predicated region
        $region37: #{tpu_custom_call.1} parent=35 // pred_check
          %p237 = pneg %p40
        $region38: #{tpu_custom_call.1} parent=35 // pred_check_branch
          %239 = sbr.rel (%p237) target = $region40
        $region39: #{tpu_custom_call.1} parent=35 // pred_region
          %p240 = scmp.lt.s32.totalorder %s20, 1
          %s241 = scalar_select %p240, %s20, 1
          %s242 = smul.addr %s241, 4
          %s243 = scalar_lea.vmem %s0, %s242
        $region40: #{tpu_custom_call.1} parent=35 // pred_fallthru
          _
      $region36: #{tpu_custom_call.1} parent=5 // pred_fallthru
        _
      %p244 = scmp.le.s32.totalorder 1, %s20
      %p245 = scmp.lt.s32.totalorder %s20, 3
      %p246 = pnand %p244, %p245
      %p247 = pneg %p246
      // Predicated region
      $region41: #{tpu_custom_call.1} parent=5 // pred_check
        _
      $region42: #{tpu_custom_call.1} parent=5 // pred_check_branch
        %249 = sbr.rel (%p246) target = $region44
      $region43: #{tpu_custom_call.1} parent=5 // pred_region
        %s250 = ssub.s32 %s20, 1
        %p251 = scmp.lt.s32.totalorder %s25, 1
        %s252 = scalar_select %p251, %s25, 1
        %s253 = smul.addr %s252, 4
        %s254 = scalar_lea.vmem %s0, %s253
        %p255 = pneg %p46
        %p256 = pneg %p43
        %p257 = pneg %p67
        %p258 = pneg %p64
        %p259 = pneg %p88
        %p260 = pneg %p85
        %p261 = pneg %p109
        %p262 = pneg %p106
        %p263 = pneg %p130
        %p264 = pneg %p127
        %p265 = pneg %p151
        %p266 = pneg %p148
        %p267 = pneg %p177
        %p268 = pneg %p174
        %s269 = sand.u32 %s164, 1
        %s270 = scalar_lea.sflag [#allocation3], %s269
        %s271 = sand.u32 %s164, 1
        %s272 = smul.addr %s271, 4
        %s273 = scalar_lea.vmem [#allocation2], %s272
        %p274 = pneg %p203
        %p275 = pneg %p200
        %s276 = sand.u32 %s190, 1
        %s277 = scalar_lea.sflag [#allocation5], %s276
        %s278 = sand.u32 %s190, 1
        %s279 = smul.addr %s278, 8
        %s280 = scalar_lea.vmem [#allocation4], %s279
        %p281 = scmp.lt.s32.totalorder %s25, 1
        %s282 = scalar_select %p281, %s25, 1
        %s283 = smul.addr %s282, 4
        %s284 = scalar_lea.vmem %s0, %s283
        %v285 = vld [vmem:[%s284] sm:$0xf]
        %v287 = vrot.slane %v285, 4
        %288 = vrot.lane.b32.xlu0 %v287, 126
        %v289 = vpop.permute.xlu0 %288
        %vm291 = vcmask 1043456
        %v292 = vsel %vm291, %v285, %v289
        %v293 = vld [vmem:[%s1] sm:$0xf]
        %vm294 = vcmask 64512
        %v296 = vsel %vm294, %v293, 0
        %298 = vmatprep.subr.mxu0 0.0
        %299 = vmatpush1.msra.mxu0 %v292
        %300 = vmatprep.subr.mxu0 0.0
        %301 = vmatpush1.msra.mxu0 0.0
        %302 = vmatprep.subr.mxu0 0.0
        %303 = vmatpush1.msra.mxu0 0.0
        %304 = vmatprep.subr.mxu0 0.0
        %305 = vmatpush1.msra.mxu0 0.0
        %306 = vmatprep.subr.mxu0 0.0
        %307 = vmatpush1.msra.mxu0 0.0
        %308 = vmatprep.subr.mxu0 0.0
        %309 = vmatpush1.msra.mxu0 0.0
        %310 = vmatprep.subr.mxu0 0.0
        %311 = vmatpush1.msra.mxu0 0.0
        %312 = vmatprep.subr.mxu0 0.0
        %313 = vmatpush1.msra.mxu0 0.0
        %314 = vmatprep.subr.mxu0 0.0
        %315 = vmatpush1.msra.mxu0 0.0
        %316 = vmatprep.subr.mxu0 0.0
        %317 = vmatpush1.msra.mxu0 0.0
        %318 = vmatprep.subr.mxu0 0.0
        %319 = vmatpush1.msra.mxu0 0.0
        %320 = vmatprep.subr.mxu0 0.0
        %321 = vmatpush1.msra.mxu0 0.0
        %322 = vmatprep.subr.mxu0 0.0
        %323 = vmatpush1.msra.mxu0 0.0
        %324 = vmatprep.subr.mxu0 0.0
        %325 = vmatpush1.msra.mxu0 0.0
        %326 = vmatprep.subr.mxu0 0.0
        %327 = vmatpush1.msra.mxu0 0.0
        %328 = vmatprep.subr.mxu0 0.0
        %329 = vmatpush1.msra.mxu0 0.0
        %330 = vmatprep.subr.mxu0 0.0
        %331 = vmatpush1.msra.mxu0 0.0
        %332 = vmatprep.subr.mxu0 0.0
        %333 = vmatpush1.msra.mxu0 0.0
        %334 = vmatprep.subr.mxu0 0.0
        %335 = vmatpush1.msra.mxu0 0.0
        %336 = vmatprep.subr.mxu0 0.0
        %337 = vmatpush1.msra.mxu0 0.0
        %338 = vmatprep.subr.mxu0 0.0
        %339 = vmatpush1.msra.mxu0 0.0
        %340 = vmatprep.subr.mxu0 0.0
        %341 = vmatpush1.msra.mxu0 0.0
        %342 = vmatprep.subr.mxu0 0.0
        %343 = vmatpush1.msra.mxu0 0.0
        %344 = vmatprep.subr.mxu0 0.0
        %345 = vmatpush1.msra.mxu0 0.0
        %346 = vmatprep.subr.mxu0 0.0
        %347 = vmatpush1.msra.mxu0 0.0
        %348 = vmatprep.subr.mxu0 0.0
        %349 = vmatpush1.msra.mxu0 0.0
        %350 = vmatprep.subr.mxu0 0.0
        %351 = vmatpush1.msra.mxu0 0.0
        %352 = vmatprep.subr.mxu0 0.0
        %353 = vmatpush1.msra.mxu0 0.0
        %354 = vmatprep.subr.mxu0 0.0
        %355 = vmatpush1.msra.mxu0 0.0
        %356 = vmatprep.subr.mxu0 0.0
        %357 = vmatpush1.msra.mxu0 0.0
        %358 = vmatprep.subr.mxu0 0.0
        %359 = vmatpush1.msra.mxu0 0.0
        %360 = vmatprep.subr.mxu0 0.0
        %361 = vmatpush1.msra.mxu0 0.0
        %362 = vmatprep.mubr.f32.mxu0 0.0
        %363 = vmatmul.mubr.f32.gmra.mrb[0].mxu0 %v296
        %v364 = vpop.f32.mrb[0].mxu0
        %v365 = vadd.f32 0.0, %v364
        %v366 = vpop.f32.mrb[0].mxu0
        %367 = vdwg.mxu0
        %v368 = vtanh.pop %v365
        %v369 = vxor.u32 %v365, 2147483648
        %v370 = vmul.f32 %v369, 1.442695
        %v371 = vpow.pop %v370
        %v372 = vadd.f32 %v371, 1.0
        %v373 = vrcp.pop %v372
        %v374 = vmul.f32 1.0, %v373
        %v375 = vmul.f32 %v368, %v374
        %v376 = vld [vmem:[%s2] sm:$0xf]
        %v377 = vld [vmem:[%s3] sm:$0xf]
        %379 = vset.pattern.permute.xlu0 0
        %380 = vperm.xlu0 %379, %v377
        %v381 = vpop.permute.xlu0 %380
        %vm383 = vcmask 31744
        %v385 = vsel %vm383, %v376, 0
        %v388 = vsel %vm291, %v375, 0
        %390 = vmatprep.subr.mxu0 0.0
        %391 = vmatpush1.msra.mxu0 %v388
        %392 = vmatprep.subr.mxu0 0.0
        %393 = vmatpush1.msra.mxu0 0.0
        %394 = vmatprep.subr.mxu0 0.0
        %395 = vmatpush1.msra.mxu0 0.0
        %396 = vmatprep.subr.mxu0 0.0
        %397 = vmatpush1.msra.mxu0 0.0
        %398 = vmatprep.subr.mxu0 0.0
        %399 = vmatpush1.msra.mxu0 0.0
        %400 = vmatprep.subr.mxu0 0.0
        %401 = vmatpush1.msra.mxu0 0.0
        %402 = vmatprep.subr.mxu0 0.0
        %403 = vmatpush1.msra.mxu0 0.0
        %404 = vmatprep.subr.mxu0 0.0
        %405 = vmatpush1.msra.mxu0 0.0
        %406 = vmatprep.subr.mxu0 0.0
        %407 = vmatpush1.msra.mxu0 0.0
        %408 = vmatprep.subr.mxu0 0.0
        %409 = vmatpush1.msra.mxu0 0.0
        %410 = vmatprep.subr.mxu0 0.0
        %411 = vmatpush1.msra.mxu0 0.0
        %412 = vmatprep.subr.mxu0 0.0
        %413 = vmatpush1.msra.mxu0 0.0
        %414 = vmatprep.subr.mxu0 0.0
        %415 = vmatpush1.msra.mxu0 0.0
        %416 = vmatprep.subr.mxu0 0.0
        %417 = vmatpush1.msra.mxu0 0.0
        %418 = vmatprep.subr.mxu0 0.0
        %419 = vmatpush1.msra.mxu0 0.0
        %420 = vmatprep.subr.mxu0 0.0
        %421 = vmatpush1.msra.mxu0 0.0
        %422 = vmatprep.subr.mxu0 0.0
        %423 = vmatpush1.msra.mxu0 0.0
        %424 = vmatprep.subr.mxu0 0.0
        %425 = vmatpush1.msra.mxu0 0.0
        %426 = vmatprep.subr.mxu0 0.0
        %427 = vmatpush1.msra.mxu0 0.0
        %428 = vmatprep.subr.mxu0 0.0
        %429 = vmatpush1.msra.mxu0 0.0
        %430 = vmatprep.subr.mxu0 0.0
        %431 = vmatpush1.msra.mxu0 0.0
        %432 = vmatprep.subr.mxu0 0.0
        %433 = vmatpush1.msra.mxu0 0.0
        %434 = vmatprep.subr.mxu0 0.0
        %435 = vmatpush1.msra.mxu0 0.0
        %436 = vmatprep.subr.mxu0 0.0
        %437 = vmatpush1.msra.mxu0 0.0
        %438 = vmatprep.subr.mxu0 0.0
        %439 = vmatpush1.msra.mxu0 0.0
        %440 = vmatprep.subr.mxu0 0.0
        %441 = vmatpush1.msra.mxu0 0.0
        %442 = vmatprep.subr.mxu0 0.0
        %443 = vmatpush1.msra.mxu0 0.0
        %444 = vmatprep.subr.mxu0 0.0
        %445 = vmatpush1.msra.mxu0 0.0
        %446 = vmatprep.subr.mxu0 0.0
        %447 = vmatpush1.msra.mxu0 0.0
        %448 = vmatprep.subr.mxu0 0.0
        %449 = vmatpush1.msra.mxu0 0.0
        %450 = vmatprep.subr.mxu0 0.0
        %451 = vmatpush1.msra.mxu0 0.0
        %452 = vmatprep.subr.mxu0 0.0
        %453 = vmatpush1.msra.mxu0 0.0
        %454 = vmatprep.mubr.f32.mxu0 0.0
        %455 = vmatmul.mubr.f32.gmra.mrb[0].mxu0 %v385
        %v456 = vpop.f32.mrb[0].mxu0
        %v457 = vadd.f32 %v381, %v456
        %v458 = vpop.f32.mrb[0].mxu0
        %459 = vdwg.mxu0
        %460 = vrot.lane.b32.xlu0 %v285, 126
        %v461 = vpop.permute.xlu0 %460
        %v463 = vadd.f32 %v457, %v461
        %vm464 = vcmask 109568
        %465 = vst.msk [vmem:[%s273] sm:$0xf] %vm464, %v463
        %v466 = vld [vmem:[%s4] sm:$0xff]
        %v467 = vld [vmem:[%s5] sm:$0xff]
        %469 = vset.pattern.permute.xlu0 0
        %470 = vperm.xlu0 %469, %v467
        %v471 = vpop.permute.xlu0 %470
        %473 = vrot.lane.b32.xlu0 %v375, 122
        %v474 = vpop.permute.xlu0 %473
        %v476 = vsel %vm383, %v466, 0
        %v478 = vsel %vm291, %v474, 0
        %480 = vmatprep.subr.mxu0 0.0
        %481 = vmatpush1.msra.mxu0 %v478
        %482 = vmatprep.subr.mxu0 0.0
        %483 = vmatpush1.msra.mxu0 0.0
        %484 = vmatprep.subr.mxu0 0.0
        %485 = vmatpush1.msra.mxu0 0.0
        %486 = vmatprep.subr.mxu0 0.0
        %487 = vmatpush1.msra.mxu0 0.0
        %488 = vmatprep.subr.mxu0 0.0
        %489 = vmatpush1.msra.mxu0 0.0
        %490 = vmatprep.subr.mxu0 0.0
        %491 = vmatpush1.msra.mxu0 0.0
        %492 = vmatprep.subr.mxu0 0.0
        %493 = vmatpush1.msra.mxu0 0.0
        %494 = vmatprep.subr.mxu0 0.0
        %495 = vmatpush1.msra.mxu0 0.0
        %496 = vmatprep.subr.mxu0 0.0
        %497 = vmatpush1.msra.mxu0 0.0
        %498 = vmatprep.subr.mxu0 0.0
        %499 = vmatpush1.msra.mxu0 0.0
        %500 = vmatprep.subr.mxu0 0.0
        %501 = vmatpush1.msra.mxu0 0.0
        %502 = vmatprep.subr.mxu0 0.0
        %503 = vmatpush1.msra.mxu0 0.0
        %504 = vmatprep.subr.mxu0 0.0
        %505 = vmatpush1.msra.mxu0 0.0
        %506 = vmatprep.subr.mxu0 0.0
        %507 = vmatpush1.msra.mxu0 0.0
        %508 = vmatprep.subr.mxu0 0.0
        %509 = vmatpush1.msra.mxu0 0.0
        %510 = vmatprep.subr.mxu0 0.0
        %511 = vmatpush1.msra.mxu0 0.0
        %512 = vmatprep.subr.mxu0 0.0
        %513 = vmatpush1.msra.mxu0 0.0
        %514 = vmatprep.subr.mxu0 0.0
        %515 = vmatpush1.msra.mxu0 0.0
        %516 = vmatprep.subr.mxu0 0.0
        %517 = vmatpush1.msra.mxu0 0.0
        %518 = vmatprep.subr.mxu0 0.0
        %519 = vmatpush1.msra.mxu0 0.0
        %520 = vmatprep.subr.mxu0 0.0
        %521 = vmatpush1.msra.mxu0 0.0
        %522 = vmatprep.subr.mxu0 0.0
        %523 = vmatpush1.msra.mxu0 0.0
        %524 = vmatprep.subr.mxu0 0.0
        %525 = vmatpush1.msra.mxu0 0.0
        %526 = vmatprep.subr.mxu0 0.0
        %527 = vmatpush1.msra.mxu0 0.0
        %528 = vmatprep.subr.mxu0 0.0
        %529 = vmatpush1.msra.mxu0 0.0
        %530 = vmatprep.subr.mxu0 0.0
        %531 = vmatpush1.msra.mxu0 0.0
        %532 = vmatprep.subr.mxu0 0.0
        %533 = vmatpush1.msra.mxu0 0.0
        %534 = vmatprep.subr.mxu0 0.0
        %535 = vmatpush1.msra.mxu0 0.0
        %536 = vmatprep.subr.mxu0 0.0
        %537 = vmatpush1.msra.mxu0 0.0
        %538 = vmatprep.subr.mxu0 0.0
        %539 = vmatpush1.msra.mxu0 0.0
        %540 = vmatprep.subr.mxu0 0.0
        %541 = vmatpush1.msra.mxu0 0.0
        %542 = vmatprep.subr.mxu0 0.0
        %543 = vmatpush1.msra.mxu0 0.0
        %544 = vmatprep.mubr.f32.mxu0 0.0
        %545 = vmatmul.mubr.f32.gmra.mrb[0].mxu0 %v476
        %v546 = vpop.f32.mrb[0].mxu0
        %v547 = vadd.f32 %v471, %v546
        %v548 = vpop.f32.mrb[0].mxu0
        %549 = vdwg.mxu0
        %550 = vst.msk [vmem:[%s280] sm:$0xff] %vm294, %v547
        %s551 = sand.u32 %s164, 1
        %s552 = scalar_lea.sflag [#allocation3], %s551
        %s553 = sand.u32 %s164, 1
        %s554 = smul.addr %s553, 4
        %s555 = scalar_lea.vmem [#allocation2], %s554
        %s556 = sand.u32 %s190, 1
        %s557 = scalar_lea.sflag [#allocation5], %s556
        %s558 = sand.u32 %s190, 1
        %s559 = smul.addr %s558, 8
        %s560 = scalar_lea.vmem [#allocation4], %s559
        // Predicated region
        $region45: #{tpu_custom_call.1} parent=43 // pred_check
          %p561 = pneg %p174
        $region46: #{tpu_custom_call.1} parent=43 // pred_check_branch
          %563 = sbr.rel (%p561) target = $region48
        $region47: #{tpu_custom_call.1} parent=43 // pred_region
          %s565 = ssub.s32 64, 64
          %566 = vsyncadd %s552, %s565
          %s567 = smul.addr %s25, 64
          %s568 = scalar_lea.hbm %s6, %s567
          %s570 = sshll.u32 %s555, 4
          %s571 = int_to_ptr.vmem [resolvable:$true] %s570
          %573 = dma.vmem_to_hbm [thread:$0]  %s571, 64, %s568, %s552
        $region48: #{tpu_custom_call.1} parent=43 // pred_fallthru
          _
        // Predicated region
        $region49: #{tpu_custom_call.1} parent=43 // pred_check
          %p574 = pneg %p200
        $region50: #{tpu_custom_call.1} parent=43 // pred_check_branch
          %576 = sbr.rel (%p574) target = $region52
        $region51: #{tpu_custom_call.1} parent=43 // pred_region
          %s578 = ssub.s32 128, 128
          %579 = vsyncadd %s557, %s578
          %s580 = smul.addr %s25, 128
          %s581 = scalar_lea.hbm %s7, %s580
          %s583 = sshll.u32 %s560, 4
          %s584 = int_to_ptr.vmem [resolvable:$true] %s583
          %586 = dma.vmem_to_hbm [thread:$0]  %s584, 128, %s581, %s557
        $region52: #{tpu_custom_call.1} parent=43 // pred_fallthru
          _
      $region44: #{tpu_custom_call.1} parent=5 // pred_fallthru
        _
      %p587 = scmp.le.s32.totalorder 2, %s20
      // Predicated region
      $region53: #{tpu_custom_call.1} parent=5 // pred_check
        %p588 = pneg %p587
      $region54: #{tpu_custom_call.1} parent=5 // pred_check_branch
        %590 = sbr.rel (%p588) target = $region56
      $region55: #{tpu_custom_call.1} parent=5 // pred_region
        %s591 = ssub.s32 %s20, 2
        // Predicated region
        $region57: #{tpu_custom_call.1} parent=55 // pred_check
          %p592 = pneg %p180
        $region58: #{tpu_custom_call.1} parent=55 // pred_check_branch
          %594 = sbr.rel (%p592) target = $region60
        $region59: #{tpu_custom_call.1} parent=55 // pred_region
          %s595 = sand.u32 %s165, 1
          %s596 = scalar_lea.sflag [#allocation3], %s595
          %s597 = sand.u32 %s165, 1
          %s598 = smul.addr %s597, 4
          %s599 = scalar_lea.vmem [#allocation2], %s598
          %600 = dma.done %s596, 64
        $region60: #{tpu_custom_call.1} parent=55 // pred_fallthru
          _
        // Predicated region
        $region61: #{tpu_custom_call.1} parent=55 // pred_check
          %p601 = pneg %p206
        $region62: #{tpu_custom_call.1} parent=55 // pred_check_branch
          %603 = sbr.rel (%p601) target = $region64
        $region63: #{tpu_custom_call.1} parent=55 // pred_region
          %s604 = sand.u32 %s191, 1
          %s605 = scalar_lea.sflag [#allocation5], %s604
          %s606 = sand.u32 %s191, 1
          %s607 = smul.addr %s606, 8
          %s608 = scalar_lea.vmem [#allocation4], %s607
          %609 = dma.done %s605, 128
        $region64: #{tpu_custom_call.1} parent=55 // pred_fallthru
          _
      $region56: #{tpu_custom_call.1} parent=5 // pred_fallthru
        _
    $region6: #{tpu_custom_call.1} parent=1 // loop_footer
      %s24 = sadd.s32 1, %s20
    $region7: #{tpu_custom_call.1} parent=1 // loop_footer_branch
      %19 = sbr.rel target = $region3
    $region8: #{tpu_custom_call.1} parent=1 // loop_exit
      _
    %610 = vsyncpa [#allocation3], 1
    %s611 = scalar_lea.sflag [#allocation3], 1
    %612 = vsyncpa %s611, 1
    %613 = vsyncpa [#allocation5], 1
    %s614 = scalar_lea.sflag [#allocation5], 1
    %615 = vsyncpa %s614, 1

</llo_original>
